<compile_context>
chip_gen: v7x
topology: tpu7x:2x2x1
jax: 0.10.0
libtpu: 0.0.40
codegen_flags: <defaults>
</compile_context>

<pallas_src>
import math
import functools

import jax
import jax.numpy as jnp
from jax import lax
from jax.experimental import pallas as pl
from jax.experimental.pallas import tpu as pltpu


def attention_head_kernel(x_ref, wq_ref, bq_ref, wk_ref, bk_ref, wv_ref, bv_ref,
                          out_ref, probs_ref, *, head_size):
    # Block shapes (batch dim squeezed by the BlockSpec):
    #   x_ref: (S, H)   wq/wk/wv_ref: (H, hs) bf16   bq/bk/bv_ref: (1, hs) f32
    #   out_ref: (S, hs)   probs_ref: (S, S)
    x2d = x_ref[...].astype(jnp.bfloat16)                                   # (S, H)

    # Projections: bf16 operands, f32 accumulation.  Weights arrive pre-cast.
    q = jnp.dot(x2d, wq_ref[...], preferred_element_type=jnp.float32) + bq_ref[...]
    k = jnp.dot(x2d, wk_ref[...], preferred_element_type=jnp.float32) + bk_ref[...]
    v = jnp.dot(x2d, wv_ref[...], preferred_element_type=jnp.float32) + bv_ref[...]

    # Fold the softmax scale into q: S*hs multiplies instead of S*S on scores.
    q = q * (1.0 / math.sqrt(head_size))

    # scores = q @ k^T  (contract the head dim of both operands).
    scores = lax.dot_general(
        q.astype(jnp.bfloat16), k.astype(jnp.bfloat16),
        dimension_numbers=(((1,), (1,)), ((), ())),
        preferred_element_type=jnp.float32)                                 # (S, S)

    # Numerically-stable softmax in f32.
    scores = scores - jnp.max(scores, axis=-1, keepdims=True)
    e = jnp.exp(scores)
    denom = jnp.sum(e, axis=-1, keepdims=True)
    r = pl.reciprocal(denom, approx=True)       # EUP slot
    r = r * (2.0 - denom * r)                   # one Newton step -> near-exact
    probs = e * r

    # TODO(synk): dropout on attention_probs is identity (inference mode).
    probs_ref[...] = probs.astype(probs_ref.dtype)

    out = jnp.dot(probs.astype(jnp.bfloat16), v.astype(jnp.bfloat16),
                  preferred_element_type=jnp.float32)                       # (S, hs)
    out_ref[...] = out.astype(out_ref.dtype)


def attention_head(x, wq, bq, wk, bk, wv, bv):
    """x: (B, S, H); wq/wk/wv: (H, head_size); bq/bk/bv: (1, head_size)."""
    B, S, H = x.shape
    head_size = wq.shape[1]

    # One-time weight preprocessing (conceptually done at weight-load time):
    # matmul operands in bf16 so the kernel body never re-casts grid-invariant
    # weights per step.  Biases stay f32 (added to the f32 accumulator).
    wq_bf = wq.astype(jnp.bfloat16)
    wk_bf = wk.astype(jnp.bfloat16)
    wv_bf = wv.astype(jnp.bfloat16)

    kernel = functools.partial(attention_head_kernel, head_size=head_size)

    x_spec = pl.BlockSpec((None, S, H), lambda b: (b, 0, 0))     # per-batch block
    w_spec = pl.BlockSpec((H, head_size), lambda b: (0, 0))      # grid-invariant
    b_spec = pl.BlockSpec((1, head_size), lambda b: (0, 0))      # grid-invariant
    out_spec = pl.BlockSpec((None, S, head_size), lambda b: (b, 0, 0))
    probs_spec = pl.BlockSpec((None, S, S), lambda b: (b, 0, 0))

    return pl.pallas_call(
        kernel,
        grid=(B,),
        out_shape=(jax.ShapeDtypeStruct((B, S, head_size), x.dtype),  # attention_output
                   jax.ShapeDtypeStruct((B, S, S), x.dtype)),         # attention_probs
        in_specs=[x_spec, w_spec, b_spec, w_spec, b_spec, w_spec, b_spec],
        out_specs=(out_spec, probs_spec),
        compiler_params=pltpu.CompilerParams(
            dimension_semantics=("parallel",),          # 2 TCs on v7x
            vmem_limit_bytes=32 * 1024 * 1024),         # within v7x's 64 MiB VMEM
    )(x, wq_bf, bq, wk_bf, bk, wv_bf, bv)


def jax_reference(x, wq, bq, wk, bk, wv, bv):
    """Pure-JAX f32 reference of the same forward pass."""
    head_size = wq.shape[1]
    q = x @ wq + bq
    k = x @ wk + bk
    v = x @ wv + bv
    scores = jnp.einsum('bqd,bkd->bqk', q, k) / math.sqrt(head_size)
    probs = jax.nn.softmax(scores, axis=-1)
    out = jnp.einsum('bqk,bkd->bqd', probs, v)
    return out, probs


if __name__ == "__main__":
    # hidden_size=32, attention_head_size=8, batch=2, seq=8
    B, S, H = 2, 8, 32
    head_size = 8

    key = jax.random.PRNGKey(0)
    kx, k0, k1, k2, k3, k4, k5 = jax.random.split(key, 7)

    w_scale = 1.0 / math.sqrt(H)   # ~ PyTorch nn.Linear default init scale
    wq = (w_scale * jax.random.normal(k0, (H, head_size))).astype(jnp.float32)
    bq = (w_scale * jax.random.normal(k1, (1, head_size))).astype(jnp.float32)
    wk = (w_scale * jax.random.normal(k2, (H, head_size))).astype(jnp.float32)
    bk = (w_scale * jax.random.normal(k3, (1, head_size))).astype(jnp.float32)
    wv = (w_scale * jax.random.normal(k4, (H, head_size))).astype(jnp.float32)
    bv = (w_scale * jax.random.normal(k5, (1, head_size))).astype(jnp.float32)

    x = jax.random.normal(kx, (B, S, H), jnp.float32)

    out, probs = attention_head(x, wq, bq, wk, bk, wv, bv)
    out, probs = jax.block_until_ready((out, probs))

    ref_out, ref_probs = jax_reference(x, wq, bq, wk, bk, wv, bv)

    assert out.shape == (B, S, head_size) and probs.shape == (B, S, S)
    # bf16 matmul operands -> loosened tolerance vs pure-f32 reference.
    assert jnp.allclose(probs, ref_probs, atol=3e-2, rtol=3e-2), "probs mismatch vs reference"
    assert jnp.allclose(out, ref_out, atol=3e-2, rtol=3e-2), "output mismatch vs reference"
    # approx reciprocal + Newton step -> rows normalize to 1 tightly.
    assert jnp.allclose(jnp.sum(probs, axis=-1), 1.0, atol=2e-3), "probs rows should sum to 1"

    print("KERNEL_OK")
</pallas_src>

<mosaic_0001>
module attributes {stable_mosaic.version = 11 : i64} {
  func.func @attention_head_kernel(%arg0: i32, %arg1: memref<1x8x32xf32, #tpu.memory_space<vmem>>, %arg2: memref<32x8xbf16, #tpu.memory_space<vmem>>, %arg3: memref<1x8xf32, #tpu.memory_space<vmem>>, %arg4: memref<32x8xbf16, #tpu.memory_space<vmem>>, %arg5: memref<1x8xf32, #tpu.memory_space<vmem>>, %arg6: memref<32x8xbf16, #tpu.memory_space<vmem>>, %arg7: memref<1x8xf32, #tpu.memory_space<vmem>>, %arg8: memref<1x8x8xf32, #tpu.memory_space<vmem>>, %arg9: memref<1x8x8xf32, #tpu.memory_space<vmem>>) attributes {dimension_semantics = [#tpu.dimension_semantics<parallel>], iteration_bounds = array<i64: 2>, scalar_prefetch = 0 : i64, scratch_operands = 0 : i64, tpu.core_type = #tpu.core_type<tc>, window_params = [{transform_indices = @transform_0, window_bounds = array<i64: 1, 8, 32>}, {pipeline_mode = #tpu.pipeline_mode<synchronous>, transform_indices = @transform_1, window_bounds = array<i64: 32, 8>}, {pipeline_mode = #tpu.pipeline_mode<synchronous>, transform_indices = @transform_2, window_bounds = array<i64: 1, 8>}, {pipeline_mode = #tpu.pipeline_mode<synchronous>, transform_indices = @transform_3, window_bounds = array<i64: 32, 8>}, {pipeline_mode = #tpu.pipeline_mode<synchronous>, transform_indices = @transform_4, window_bounds = array<i64: 1, 8>}, {pipeline_mode = #tpu.pipeline_mode<synchronous>, transform_indices = @transform_5, window_bounds = array<i64: 32, 8>}, {pipeline_mode = #tpu.pipeline_mode<synchronous>, transform_indices = @transform_6, window_bounds = array<i64: 1, 8>}, {transform_indices = @transform_7, window_bounds = array<i64: 1, 8, 8>}, {transform_indices = @transform_8, window_bounds = array<i64: 1, 8, 8>}]} {
    %c0 = arith.constant 0 : index
    %c0_0 = arith.constant 0 : index
    %c0_1 = arith.constant 0 : index
    %0 = vector.load %arg1[%c0, %c0_0, %c0_1] : memref<1x8x32xf32, #tpu.memory_space<vmem>>, vector<1x8x32xf32>
    %1 = vector.shape_cast %0 : vector<1x8x32xf32> to vector<8x32xf32>
    %2 = arith.truncf %1 : vector<8x32xf32> to vector<8x32xbf16>
    %c0_2 = arith.constant 0 : index
    %c0_3 = arith.constant 0 : index
    %3 = vector.load %arg2[%c0_2, %c0_3] : memref<32x8xbf16, #tpu.memory_space<vmem>>, vector<32x8xbf16>
    %cst = arith.constant dense<0.000000e+00> : vector<8x8xf32>
    %4 = tpu.matmul %2, %3, %cst {dimension_numbers = #tpu.dot_dimension_numbers<[1], [0], [0], [1], [0, 0, 1, 1], [], []>} : vector<8x32xbf16>, vector<32x8xbf16>, vector<8x8xf32> -> vector<8x8xf32>
    %c0_4 = arith.constant 0 : index
    %c0_5 = arith.constant 0 : index
    %5 = vector.load %arg3[%c0_4, %c0_5] : memref<1x8xf32, #tpu.memory_space<vmem>>, vector<1x8xf32>
    %6 = vector.broadcast %5 : vector<1x8xf32> to vector<8x8xf32>
    %7 = arith.addf %4, %6 : vector<8x8xf32>
    %c0_6 = arith.constant 0 : index
    %c0_7 = arith.constant 0 : index
    %8 = vector.load %arg4[%c0_6, %c0_7] : memref<32x8xbf16, #tpu.memory_space<vmem>>, vector<32x8xbf16>
    %cst_8 = arith.constant dense<0.000000e+00> : vector<8x8xf32>
    %9 = tpu.matmul %2, %8, %cst_8 {dimension_numbers = #tpu.dot_dimension_numbers<[1], [0], [0], [1], [0, 0, 1, 1], [], []>} : vector<8x32xbf16>, vector<32x8xbf16>, vector<8x8xf32> -> vector<8x8xf32>
    %c0_9 = arith.constant 0 : index
    %c0_10 = arith.constant 0 : index
    %10 = vector.load %arg5[%c0_9, %c0_10] : memref<1x8xf32, #tpu.memory_space<vmem>>, vector<1x8xf32>
    %11 = vector.broadcast %10 : vector<1x8xf32> to vector<8x8xf32>
    %12 = arith.addf %9, %11 : vector<8x8xf32>
    %c0_11 = arith.constant 0 : index
    %c0_12 = arith.constant 0 : index
    %13 = vector.load %arg6[%c0_11, %c0_12] : memref<32x8xbf16, #tpu.memory_space<vmem>>, vector<32x8xbf16>
    %cst_13 = arith.constant dense<0.000000e+00> : vector<8x8xf32>
    %14 = tpu.matmul %2, %13, %cst_13 {dimension_numbers = #tpu.dot_dimension_numbers<[1], [0], [0], [1], [0, 0, 1, 1], [], []>} : vector<8x32xbf16>, vector<32x8xbf16>, vector<8x8xf32> -> vector<8x8xf32>
    %c0_14 = arith.constant 0 : index
    %c0_15 = arith.constant 0 : index
    %15 = vector.load %arg7[%c0_14, %c0_15] : memref<1x8xf32, #tpu.memory_space<vmem>>, vector<1x8xf32>
    %16 = vector.broadcast %15 : vector<1x8xf32> to vector<8x8xf32>
    %17 = arith.addf %14, %16 : vector<8x8xf32>
    %cst_16 = arith.constant 0.353553385 : f32
    %18 = vector.broadcast %cst_16 : f32 to vector<8x8xf32>
    %19 = arith.mulf %7, %18 : vector<8x8xf32>
    %20 = arith.truncf %19 : vector<8x8xf32> to vector<8x8xbf16>
    %21 = arith.truncf %12 : vector<8x8xf32> to vector<8x8xbf16>
    %cst_17 = arith.constant dense<0.000000e+00> : vector<8x8xf32>
    %22 = tpu.matmul %20, %21, %cst_17 {dimension_numbers = #tpu.dot_dimension_numbers<[1], [1], [0], [0], [0, 0, 1, 0], [], []>} : vector<8x8xbf16>, vector<8x8xbf16>, vector<8x8xf32> -> vector<8x8xf32>
    %cst_18 = arith.constant dense<0xFF800000> : vector<8xf32>
    %23 = vector.multi_reduction <maximumf>, %22, %cst_18 [1] : vector<8x8xf32> to vector<8xf32>
    %24 = vector.shape_cast %23 : vector<8xf32> to vector<8x1xf32>
    %25 = vector.broadcast %24 : vector<8x1xf32> to vector<8x8xf32>
    %26 = arith.subf %22, %25 : vector<8x8xf32>
    %27 = math.exp %26 : vector<8x8xf32>
    %cst_19 = arith.constant dense<0.000000e+00> : vector<8xf32>
    %28 = vector.multi_reduction <add>, %27, %cst_19 [1] : vector<8x8xf32> to vector<8xf32>
    %29 = vector.shape_cast %28 : vector<8xf32> to vector<8x1xf32>
    %30 = tpu.reciprocal %29 {approx = true} : vector<8x1xf32> -> vector<8x1xf32>
    %31 = arith.mulf %29, %30 : vector<8x1xf32>
    %cst_20 = arith.constant 2.000000e+00 : f32
    %32 = vector.broadcast %cst_20 : f32 to vector<8x1xf32>
    %33 = arith.subf %32, %31 : vector<8x1xf32>
    %34 = arith.mulf %30, %33 : vector<8x1xf32>
    %35 = vector.broadcast %34 : vector<8x1xf32> to vector<8x8xf32>
    %36 = arith.mulf %27, %35 : vector<8x8xf32>
    %c0_21 = arith.constant 0 : index
    %c0_22 = arith.constant 0 : index
    %c0_23 = arith.constant 0 : index
    %37 = vector.load %arg9[%c0_21, %c0_22, %c0_23] : memref<1x8x8xf32, #tpu.memory_space<vmem>>, vector<1x8x8xf32>
    %38 = vector.shape_cast %37 : vector<1x8x8xf32> to vector<8x8xf32>
    %39 = vector.shape_cast %36 : vector<8x8xf32> to vector<1x8x8xf32>
    tpu.vector_store %arg9[%c0_21, %c0_22, %c0_23], %39 {strides = array<i32>} : memref<1x8x8xf32, #tpu.memory_space<vmem>>, vector<1x8x8xf32>,
    %40 = arith.truncf %36 : vector<8x8xf32> to vector<8x8xbf16>
    %41 = arith.truncf %17 : vector<8x8xf32> to vector<8x8xbf16>
    %cst_24 = arith.constant dense<0.000000e+00> : vector<8x8xf32>
    %42 = tpu.matmul %40, %41, %cst_24 {dimension_numbers = #tpu.dot_dimension_numbers<[1], [0], [0], [1], [0, 0, 1, 1], [], []>} : vector<8x8xbf16>, vector<8x8xbf16>, vector<8x8xf32> -> vector<8x8xf32>
    %c0_25 = arith.constant 0 : index
    %c0_26 = arith.constant 0 : index
    %c0_27 = arith.constant 0 : index
    %43 = vector.load %arg8[%c0_25, %c0_26, %c0_27] : memref<1x8x8xf32, #tpu.memory_space<vmem>>, vector<1x8x8xf32>
    %44 = vector.shape_cast %43 : vector<1x8x8xf32> to vector<8x8xf32>
    %45 = vector.shape_cast %42 : vector<8x8xf32> to vector<1x8x8xf32>
    tpu.vector_store %arg8[%c0_25, %c0_26, %c0_27], %45 {strides = array<i32>} : memref<1x8x8xf32, #tpu.memory_space<vmem>>, vector<1x8x8xf32>,
    return
  }
  func.func @transform_0(%arg0: i32) -> (i32, i32, i32) {
    %c0_i32 = arith.constant 0 : i32
    %c0_i32_0 = arith.constant 0 : i32
    %c0_i32_1 = arith.constant 0 : i32
    return %arg0, %c0_i32, %c0_i32_0 : i32, i32, i32
  }
  func.func @transform_1(%arg0: i32) -> (i32, i32) {
    %c0_i32 = arith.constant 0 : i32
    %c0_i32_0 = arith.constant 0 : i32
    %c0_i32_1 = arith.constant 0 : i32
    return %c0_i32, %c0_i32_0 : i32, i32
  }
  func.func @transform_2(%arg0: i32) -> (i32, i32) {
    %c0_i32 = arith.constant 0 : i32
    %c0_i32_0 = arith.constant 0 : i32
    %c0_i32_1 = arith.constant 0 : i32
    return %c0_i32, %c0_i32_0 : i32, i32
  }
  func.func @transform_3(%arg0: i32) -> (i32, i32) {
    %c0_i32 = arith.constant 0 : i32
    %c0_i32_0 = arith.constant 0 : i32
    %c0_i32_1 = arith.constant 0 : i32
    return %c0_i32, %c0_i32_0 : i32, i32
  }
  func.func @transform_4(%arg0: i32) -> (i32, i32) {
    %c0_i32 = arith.constant 0 : i32
    %c0_i32_0 = arith.constant 0 : i32
    %c0_i32_1 = arith.constant 0 : i32
    return %c0_i32, %c0_i32_0 : i32, i32
  }
  func.func @transform_5(%arg0: i32) -> (i32, i32) {
    %c0_i32 = arith.constant 0 : i32
    %c0_i32_0 = arith.constant 0 : i32
    %c0_i32_1 = arith.constant 0 : i32
    return %c0_i32, %c0_i32_0 : i32, i32
  }
  func.func @transform_6(%arg0: i32) -> (i32, i32) {
    %c0_i32 = arith.constant 0 : i32
    %c0_i32_0 = arith.constant 0 : i32
    %c0_i32_1 = arith.constant 0 : i32
    return %c0_i32, %c0_i32_0 : i32, i32
  }
  func.func @transform_7(%arg0: i32) -> (i32, i32, i32) {
    %c0_i32 = arith.constant 0 : i32
    %c0_i32_0 = arith.constant 0 : i32
    %c0_i32_1 = arith.constant 0 : i32
    return %arg0, %c0_i32, %c0_i32_0 : i32, i32, i32
  }
  func.func @transform_8(%arg0: i32) -> (i32, i32, i32) {
    %c0_i32 = arith.constant 0 : i32
    %c0_i32_0 = arith.constant 0 : i32
    %c0_i32_1 = arith.constant 0 : i32
    return %arg0, %c0_i32, %c0_i32_0 : i32, i32, i32
  }
}

</mosaic_0001>

<llo_original>
// kernel: tpu_custom_call.1
$region0: #{tpu_custom_call.1}
  #allocation0 [shape = 'u32[]', space=smem, size = 0x4, offset = 0x4, fixed_abs, tag = 'smem constant byte address 0x4 - core index']
  #allocation1 [shape = 'u32[144,128]{1,0:T(1,128)}', space=vmem, size = 0x12000, scoped, tag = 'internal scratch']
  %s0 = inlined_call_operand.vmem [shape: f32[2,8,32], index: 0, kind: input, shape index: {}]
  %s1 = inlined_call_operand.vmem [shape: bf16[32,8], index: 1, kind: input, shape index: {}]
  %s2 = inlined_call_operand.vmem [shape: f32[1,8], index: 2, kind: input, shape index: {}]
  %s3 = inlined_call_operand.vmem [shape: bf16[32,8], index: 3, kind: input, shape index: {}]
  %s4 = inlined_call_operand.vmem [shape: f32[1,8], index: 4, kind: input, shape index: {}]
  %s5 = inlined_call_operand.vmem [shape: bf16[32,8], index: 5, kind: input, shape index: {}]
  %s6 = inlined_call_operand.vmem [shape: f32[1,8], index: 6, kind: input, shape index: {}]
  %s7 = inlined_call_operand.hbm [shape: f32[2,8,8], index: 7, kind: output, shape index: {0}]
  %s8 = inlined_call_operand.hbm [shape: f32[2,8,8], index: 8, kind: output, shape index: {1}]
  %9 = xla_tuple %s7, %s8
  %s10 = sld [smem:[#allocation0]]
  $region69: #{tpu_custom_call.1} parent=0
    _
  %s12 = ssub.s32 1, %s10
  %s13 = scalar_select 0, %s12, %s10
  $region1: #{tpu_custom_call.1} parent=0
    #allocation2 [shape = 'u8[8192]{0}', space=vmem, size = 0x2000, scoped, tag = 'output window, operand 0']
    #allocation3 [shape = 's32[2]{0}', space=sflag, size = 0x8, scoped, tag = 'scoped memory for tpu_custom_call.1']
    #allocation4 [shape = 'u8[8192]{0}', space=vmem, size = 0x2000, scoped, tag = 'output window, operand 1']
    #allocation5 [shape = 's32[2]{0}', space=sflag, size = 0x8, scoped, tag = 'scoped memory for tpu_custom_call.1']
    %14 = vsyncpa [#allocation3], 0
    %s15 = scalar_lea.sflag [#allocation3], 1
    %16 = vsyncpa %s15, 0
    %17 = vsyncpa [#allocation5], 0
    %s18 = scalar_lea.sflag [#allocation5], 1
    %19 = vsyncpa %s18, 0
    loop: start=0, step=1, limit=4
    $region2: #{tpu_custom_call.1} parent=1 // loop_pre_header
      _
    $region3: #{tpu_custom_call.1} parent=1 // loop_header
      %s21 = sphi 0, %s25
      %p22 = scmp.ge.s32.totalorder %s21, 4
      %s31 = sphi 0, %s33
      %s34 = sphi 0, %s31
      %s35 = sphi 0, %s34
      %s51 = sphi 0, %s35
      %s55 = sphi 0, %s55
      %s57 = sphi 0, %s55
      %s58 = sphi 0, %s57
      %s72 = sphi 0, %s58
      %s76 = sphi 0, %s76
      %s78 = sphi 0, %s76
      %s79 = sphi 0, %s78
      %s93 = sphi 0, %s79
      %s97 = sphi 0, %s97
      %s99 = sphi 0, %s97
      %s100 = sphi 0, %s99
      %s114 = sphi 0, %s100
      %s118 = sphi 0, %s118
      %s120 = sphi 0, %s118
      %s121 = sphi 0, %s120
      %s135 = sphi 0, %s121
      %s139 = sphi 0, %s139
      %s141 = sphi 0, %s139
      %s142 = sphi 0, %s141
      %s156 = sphi 0, %s142
      %s160 = sphi 0, %s160
      %s162 = sphi 0, %s160
      %s163 = sphi 0, %s162
      %s177 = sphi 0, %s163
      %s183 = sphi 0, %s185
      %s186 = sphi 0, %s183
      %s187 = sphi 0, %s186
      %s203 = sphi 0, %s187
      %s209 = sphi 0, %s211
      %s212 = sphi 0, %s209
      %s213 = sphi 0, %s212
      %s229 = sphi 0, %s213
    $region4: #{tpu_custom_call.1} parent=1 // loop_header_branch
      %24 = sbr.rel (%p22) target = $region8
    $region5: #{tpu_custom_call.1} parent=1 // loop_body
      %s26 = ssub.s32 %s21, 1
      %s27 = ssub.s32 %s21, 2
      %s28 = sadd.s32 %s21, 1
      %s29 = ssub.s32 %s21, %s28
      %p30 = scmp.eq.s32.totalorder %s29, 0
      %s32 = sadd.s32 %s31, 1
      %s33 = scalar_select %p30, %s31, %s32
      %p36 = pneg %p30
      %p37 = scmp.eq.s32.totalorder %s21, 1
      %p38 = por %p36, %p37
      %p39 = scmp.ne.s32.totalorder %s31, %s34
      %p40 = scmp.eq.s32.totalorder %s21, 0
      %p41 = por %p39, %p40
      %p42 = scmp.ne.s32.totalorder %s31, %s34
      %p43 = scmp.eq.s32.totalorder %s26, 1
      %p44 = por %p42, %p43
      %p45 = scmp.ne.s32.totalorder %s34, %s35
      %p46 = scmp.eq.s32.totalorder %s26, 0
      %p47 = por %p45, %p46
      %p48 = scmp.ne.s32.totalorder %s34, %s35
      %p49 = scmp.eq.s32.totalorder %s27, 1
      %p50 = por %p48, %p49
      %p52 = scmp.ne.s32.totalorder %s35, %s51
      %p53 = scmp.eq.s32.totalorder %s27, 0
      %p54 = por %p52, %p53
      %s56 = sadd.s32 %s55, 1
      %p59 = scmp.eq.s32.totalorder %s21, 1
      %p60 = scmp.ne.s32.totalorder %s55, %s57
      %p61 = scmp.eq.s32.totalorder %s21, 0
      %p62 = por %p60, %p61
      %p63 = scmp.ne.s32.totalorder %s55, %s57
      %p64 = scmp.eq.s32.totalorder %s26, 1
      %p65 = por %p63, %p64
      %p66 = scmp.ne.s32.totalorder %s57, %s58
      %p67 = scmp.eq.s32.totalorder %s26, 0
      %p68 = por %p66, %p67
      %p69 = scmp.ne.s32.totalorder %s57, %s58
      %p70 = scmp.eq.s32.totalorder %s27, 1
      %p71 = por %p69, %p70
      %p73 = scmp.ne.s32.totalorder %s58, %s72
      %p74 = scmp.eq.s32.totalorder %s27, 0
      %p75 = por %p73, %p74
      %s77 = sadd.s32 %s76, 1
      %p80 = scmp.eq.s32.totalorder %s21, 1
      %p81 = scmp.ne.s32.totalorder %s76, %s78
      %p82 = scmp.eq.s32.totalorder %s21, 0
      %p83 = por %p81, %p82
      %p84 = scmp.ne.s32.totalorder %s76, %s78
      %p85 = scmp.eq.s32.totalorder %s26, 1
      %p86 = por %p84, %p85
      %p87 = scmp.ne.s32.totalorder %s78, %s79
      %p88 = scmp.eq.s32.totalorder %s26, 0
      %p89 = por %p87, %p88
      %p90 = scmp.ne.s32.totalorder %s78, %s79
      %p91 = scmp.eq.s32.totalorder %s27, 1
      %p92 = por %p90, %p91
      %p94 = scmp.ne.s32.totalorder %s79, %s93
      %p95 = scmp.eq.s32.totalorder %s27, 0
      %p96 = por %p94, %p95
      %s98 = sadd.s32 %s97, 1
      %p101 = scmp.eq.s32.totalorder %s21, 1
      %p102 = scmp.ne.s32.totalorder %s97, %s99
      %p103 = scmp.eq.s32.totalorder %s21, 0
      %p104 = por %p102, %p103
      %p105 = scmp.ne.s32.totalorder %s97, %s99
      %p106 = scmp.eq.s32.totalorder %s26, 1
      %p107 = por %p105, %p106
      %p108 = scmp.ne.s32.totalorder %s99, %s100
      %p109 = scmp.eq.s32.totalorder %s26, 0
      %p110 = por %p108, %p109
      %p111 = scmp.ne.s32.totalorder %s99, %s100
      %p112 = scmp.eq.s32.totalorder %s27, 1
      %p113 = por %p111, %p112
      %p115 = scmp.ne.s32.totalorder %s100, %s114
      %p116 = scmp.eq.s32.totalorder %s27, 0
      %p117 = por %p115, %p116
      %s119 = sadd.s32 %s118, 1
      %p122 = scmp.eq.s32.totalorder %s21, 1
      %p123 = scmp.ne.s32.totalorder %s118, %s120
      %p124 = scmp.eq.s32.totalorder %s21, 0
      %p125 = por %p123, %p124
      %p126 = scmp.ne.s32.totalorder %s118, %s120
      %p127 = scmp.eq.s32.totalorder %s26, 1
      %p128 = por %p126, %p127
      %p129 = scmp.ne.s32.totalorder %s120, %s121
      %p130 = scmp.eq.s32.totalorder %s26, 0
      %p131 = por %p129, %p130
      %p132 = scmp.ne.s32.totalorder %s120, %s121
      %p133 = scmp.eq.s32.totalorder %s27, 1
      %p134 = por %p132, %p133
      %p136 = scmp.ne.s32.totalorder %s121, %s135
      %p137 = scmp.eq.s32.totalorder %s27, 0
      %p138 = por %p136, %p137
      %s140 = sadd.s32 %s139, 1
      %p143 = scmp.eq.s32.totalorder %s21, 1
      %p144 = scmp.ne.s32.totalorder %s139, %s141
      %p145 = scmp.eq.s32.totalorder %s21, 0
      %p146 = por %p144, %p145
      %p147 = scmp.ne.s32.totalorder %s139, %s141
      %p148 = scmp.eq.s32.totalorder %s26, 1
      %p149 = por %p147, %p148
      %p150 = scmp.ne.s32.totalorder %s141, %s142
      %p151 = scmp.eq.s32.totalorder %s26, 0
      %p152 = por %p150, %p151
      %p153 = scmp.ne.s32.totalorder %s141, %s142
      %p154 = scmp.eq.s32.totalorder %s27, 1
      %p155 = por %p153, %p154
      %p157 = scmp.ne.s32.totalorder %s142, %s156
      %p158 = scmp.eq.s32.totalorder %s27, 0
      %p159 = por %p157, %p158
      %s161 = sadd.s32 %s160, 1
      %p164 = scmp.eq.s32.totalorder %s21, 1
      %p165 = scmp.ne.s32.totalorder %s160, %s162
      %p166 = scmp.eq.s32.totalorder %s21, 0
      %p167 = por %p165, %p166
      %p168 = scmp.ne.s32.totalorder %s160, %s162
      %p169 = scmp.eq.s32.totalorder %s26, 1
      %p170 = por %p168, %p169
      %p171 = scmp.ne.s32.totalorder %s162, %s163
      %p172 = scmp.eq.s32.totalorder %s26, 0
      %p173 = por %p171, %p172
      %p174 = scmp.ne.s32.totalorder %s162, %s163
      %p175 = scmp.eq.s32.totalorder %s27, 1
      %p176 = por %p174, %p175
      %p178 = scmp.ne.s32.totalorder %s163, %s177
      %p179 = scmp.eq.s32.totalorder %s27, 0
      %p180 = por %p178, %p179
      %s181 = ssub.s32 %s21, %s28
      %p182 = scmp.eq.s32.totalorder %s181, 0
      %s184 = sadd.s32 %s183, 1
      %s185 = scalar_select %p182, %s183, %s184
      %p188 = pneg %p182
      %p189 = scmp.eq.s32.totalorder %s21, 1
      %p190 = por %p188, %p189
      %p191 = scmp.ne.s32.totalorder %s183, %s186
      %p192 = scmp.eq.s32.totalorder %s21, 0
      %p193 = por %p191, %p192
      %p194 = scmp.ne.s32.totalorder %s183, %s186
      %p195 = scmp.eq.s32.totalorder %s26, 1
      %p196 = por %p194, %p195
      %p197 = scmp.ne.s32.totalorder %s186, %s187
      %p198 = scmp.eq.s32.totalorder %s26, 0
      %p199 = por %p197, %p198
      %p200 = scmp.ne.s32.totalorder %s186, %s187
      %p201 = scmp.eq.s32.totalorder %s27, 1
      %p202 = por %p200, %p201
      %p204 = scmp.ne.s32.totalorder %s187, %s203
      %p205 = scmp.eq.s32.totalorder %s27, 0
      %p206 = por %p204, %p205
      %s207 = ssub.s32 %s21, %s28
      %p208 = scmp.eq.s32.totalorder %s207, 0
      %s210 = sadd.s32 %s209, 1
      %s211 = scalar_select %p208, %s209, %s210
      %p214 = pneg %p208
      %p215 = scmp.eq.s32.totalorder %s21, 1
      %p216 = por %p214, %p215
      %p217 = scmp.ne.s32.totalorder %s209, %s212
      %p218 = scmp.eq.s32.totalorder %s21, 0
      %p219 = por %p217, %p218
      %p220 = scmp.ne.s32.totalorder %s209, %s212
      %p221 = scmp.eq.s32.totalorder %s26, 1
      %p222 = por %p220, %p221
      %p223 = scmp.ne.s32.totalorder %s212, %s213
      %p224 = scmp.eq.s32.totalorder %s26, 0
      %p225 = por %p223, %p224
      %p226 = scmp.ne.s32.totalorder %s212, %s213
      %p227 = scmp.eq.s32.totalorder %s27, 1
      %p228 = por %p226, %p227
      %p230 = scmp.ne.s32.totalorder %s213, %s229
      %p231 = scmp.eq.s32.totalorder %s27, 0
      %p232 = por %p230, %p231
      %p233 = scmp.le.s32.totalorder 1, %s21
      %p234 = scmp.lt.s32.totalorder %s21, 3
      %p235 = pnand %p233, %p234
      %p236 = pneg %p235
      // Predicated region
      $region9: #{tpu_custom_call.1} parent=5 // pred_check
        _
      $region10: #{tpu_custom_call.1} parent=5 // pred_check_branch
        %238 = sbr.rel (%p235) target = $region12
      $region11: #{tpu_custom_call.1} parent=5 // pred_region
        %s239 = ssub.s32 %s21, 1
        // Predicated region
        $region13: #{tpu_custom_call.1} parent=11 // pred_check
          %p240 = pneg %p68
        $region14: #{tpu_custom_call.1} parent=11 // pred_check_branch
          %242 = sbr.rel (%p240) target = $region16
        $region15: #{tpu_custom_call.1} parent=11 // pred_region
          _
        $region16: #{tpu_custom_call.1} parent=11 // pred_fallthru
          _
        // Predicated region
        $region17: #{tpu_custom_call.1} parent=11 // pred_check
          %p243 = pneg %p89
        $region18: #{tpu_custom_call.1} parent=11 // pred_check_branch
          %245 = sbr.rel (%p243) target = $region20
        $region19: #{tpu_custom_call.1} parent=11 // pred_region
          _
        $region20: #{tpu_custom_call.1} parent=11 // pred_fallthru
          _
        // Predicated region
        $region21: #{tpu_custom_call.1} parent=11 // pred_check
          %p246 = pneg %p110
        $region22: #{tpu_custom_call.1} parent=11 // pred_check_branch
          %248 = sbr.rel (%p246) target = $region24
        $region23: #{tpu_custom_call.1} parent=11 // pred_region
          _
        $region24: #{tpu_custom_call.1} parent=11 // pred_fallthru
          _
        // Predicated region
        $region25: #{tpu_custom_call.1} parent=11 // pred_check
          %p249 = pneg %p131
        $region26: #{tpu_custom_call.1} parent=11 // pred_check_branch
          %251 = sbr.rel (%p249) target = $region28
        $region27: #{tpu_custom_call.1} parent=11 // pred_region
          _
        $region28: #{tpu_custom_call.1} parent=11 // pred_fallthru
          _
        // Predicated region
        $region29: #{tpu_custom_call.1} parent=11 // pred_check
          %p252 = pneg %p152
        $region30: #{tpu_custom_call.1} parent=11 // pred_check_branch
          %254 = sbr.rel (%p252) target = $region32
        $region31: #{tpu_custom_call.1} parent=11 // pred_region
          _
        $region32: #{tpu_custom_call.1} parent=11 // pred_fallthru
          _
        // Predicated region
        $region33: #{tpu_custom_call.1} parent=11 // pred_check
          %p255 = pneg %p173
        $region34: #{tpu_custom_call.1} parent=11 // pred_check_branch
          %257 = sbr.rel (%p255) target = $region36
        $region35: #{tpu_custom_call.1} parent=11 // pred_region
          _
        $region36: #{tpu_custom_call.1} parent=11 // pred_fallthru
          _
      $region12: #{tpu_custom_call.1} parent=5 // pred_fallthru
        _
      %p258 = scmp.lt.s32.totalorder %s21, 2
      // Predicated region
      $region37: #{tpu_custom_call.1} parent=5 // pred_check
        %p259 = pneg %p258
      $region38: #{tpu_custom_call.1} parent=5 // pred_check_branch
        %261 = sbr.rel (%p259) target = $region40
      $region39: #{tpu_custom_call.1} parent=5 // pred_region
        // Predicated region
        $region41: #{tpu_custom_call.1} parent=39 // pred_check
          %p262 = pneg %p41
        $region42: #{tpu_custom_call.1} parent=39 // pred_check_branch
          %264 = sbr.rel (%p262) target = $region44
        $region43: #{tpu_custom_call.1} parent=39 // pred_region
          %p265 = scmp.lt.s32.totalorder %s21, 1
          %s266 = scalar_select %p265, %s21, 1
          %s267 = smul.addr %s266, 8
          %s268 = scalar_lea.vmem %s0, %s267
        $region44: #{tpu_custom_call.1} parent=39 // pred_fallthru
          _
      $region40: #{tpu_custom_call.1} parent=5 // pred_fallthru
        _
      %p269 = scmp.le.s32.totalorder 1, %s21
      %p270 = scmp.lt.s32.totalorder %s21, 3
      %p271 = pnand %p269, %p270
      %p272 = pneg %p271
      // Predicated region
      $region45: #{tpu_custom_call.1} parent=5 // pred_check
        _
      $region46: #{tpu_custom_call.1} parent=5 // pred_check_branch
        %274 = sbr.rel (%p271) target = $region48
      $region47: #{tpu_custom_call.1} parent=5 // pred_region
        %s275 = ssub.s32 %s21, 1
        %p276 = scmp.lt.s32.totalorder %s26, 1
        %s277 = scalar_select %p276, %s26, 1
        %s278 = smul.addr %s277, 8
        %s279 = scalar_lea.vmem %s0, %s278
        %p280 = pneg %p47
        %p281 = pneg %p44
        %p282 = pneg %p68
        %p283 = pneg %p65
        %p284 = pneg %p89
        %p285 = pneg %p86
        %p286 = pneg %p110
        %p287 = pneg %p107
        %p288 = pneg %p131
        %p289 = pneg %p128
        %p290 = pneg %p152
        %p291 = pneg %p149
        %p292 = pneg %p173
        %p293 = pneg %p170
        %p294 = pneg %p199
        %p295 = pneg %p196
        %s296 = sand.u32 %s186, 1
        %s297 = scalar_lea.sflag [#allocation3], %s296
        %s298 = sand.u32 %s186, 1
        %s299 = smul.addr %s298, 8
        %s300 = scalar_lea.vmem [#allocation2], %s299
        %p301 = pneg %p225
        %p302 = pneg %p222
        %s303 = sand.u32 %s212, 1
        %s304 = scalar_lea.sflag [#allocation5], %s303
        %s305 = sand.u32 %s212, 1
        %s306 = smul.addr %s305, 8
        %s307 = scalar_lea.vmem [#allocation4], %s306
        %p308 = scmp.lt.s32.totalorder %s26, 1
        %s309 = scalar_select %p308, %s26, 1
        %s310 = smul.addr %s309, 8
        %s311 = scalar_lea.vmem %s0, %s310
        %v313 = vld [vmem:[%s311] sm:$0xff]
        %v314 = vpack.c.bf16 %v313, %v313
        %v315 = vld [vmem:[%s1] sm:$0xf]
        %v316 = vld [vmem:[%s1 + $0x4] sm:$0xf]
        %v317 = vld [vmem:[%s1 + $0x8] sm:$0xf]
        %v318 = vld [vmem:[%s1 + $0xc] sm:$0xf]
        %v319 = vld [vmem:[%s2] sm:$0x1]
        %v321 = vlaneseq
        %v322 = vshrl.u32 %v321, 7
        %v323 = vsub.s32 0, %v322
        %v324 = vrot.slane %v319, %v323
        %v330 = vunpack.c.l.b16 %v315
        %v331 = vunpack.c.l.b16 %v316
        %v332 = vunpack.c.l.b16 %v317
        %v333 = vunpack.c.l.b16 %v318
        %v334 = vpack.c.b16 %v331, %v330
        %v335 = vpack.c.b16 %v333, %v332
        %vm338 = vcmask 261120
        %v340 = vsel %vm338, %v314, 0
        %342 = vmatprep.subr.bf16.mxu0 0
        %343 = vmatpush1.bf16.msra.mxu0 %v334
        %344 = vmatprep.subr.bf16.mxu0 0
        %345 = vmatpush1.bf16.msra.mxu0 %v335
        %346 = vmatprep.subr.bf16.mxu0 0
        %347 = vmatpush1.bf16.msra.mxu0 0
        %348 = vmatprep.subr.bf16.mxu0 0
        %349 = vmatpush1.bf16.msra.mxu0 0
        %350 = vmatprep.subr.bf16.mxu0 0
        %351 = vmatpush1.bf16.msra.mxu0 0
        %352 = vmatprep.subr.bf16.mxu0 0
        %353 = vmatpush1.bf16.msra.mxu0 0
        %354 = vmatprep.subr.bf16.mxu0 0
        %355 = vmatpush1.bf16.msra.mxu0 0
        %356 = vmatprep.subr.bf16.mxu0 0
        %357 = vmatpush1.bf16.msra.mxu0 0
        %358 = vmatprep.subr.bf16.mxu0 0
        %359 = vmatpush1.bf16.msra.mxu0 0
        %360 = vmatprep.subr.bf16.mxu0 0
        %361 = vmatpush1.bf16.msra.mxu0 0
        %362 = vmatprep.subr.bf16.mxu0 0
        %363 = vmatpush1.bf16.msra.mxu0 0
        %364 = vmatprep.subr.bf16.mxu0 0
        %365 = vmatpush1.bf16.msra.mxu0 0
        %366 = vmatprep.subr.bf16.mxu0 0
        %367 = vmatpush1.bf16.msra.mxu0 0
        %368 = vmatprep.subr.bf16.mxu0 0
        %369 = vmatpush1.bf16.msra.mxu0 0
        %370 = vmatprep.subr.bf16.mxu0 0
        %371 = vmatpush1.bf16.msra.mxu0 0
        %372 = vmatprep.subr.bf16.mxu0 0
        %373 = vmatpush1.bf16.msra.mxu0 0
        %374 = vmatprep.mubr.bf16.mxu0 0
        %375 = vmatmul.mubr.bf16.gmra.mrb[0].mxu0 %v340
        %v376 = vpop.f32.mrb[0].mxu0
        %v377 = vadd.f32 %v324, %v376
        %v378 = vpop.f32.mrb[0].mxu0
        %v379 = vpop.f32.mrb[0].mxu0
        %v380 = vpop.f32.mrb[0].mxu0
        %381 = vdwg.mxu0
        %v382 = vld [vmem:[%s3] sm:$0xf]
        %v383 = vld [vmem:[%s3 + $0x4] sm:$0xf]
        %v384 = vld [vmem:[%s3 + $0x8] sm:$0xf]
        %v385 = vld [vmem:[%s3 + $0xc] sm:$0xf]
        %v386 = vld [vmem:[%s4] sm:$0x1]
        %v388 = vlaneseq
        %v389 = vshrl.u32 %v388, 7
        %v390 = vsub.s32 0, %v389
        %v391 = vrot.slane %v386, %v390
        %v397 = vunpack.c.l.b16 %v382
        %v398 = vunpack.c.l.b16 %v383
        %v399 = vunpack.c.l.b16 %v384
        %v400 = vunpack.c.l.b16 %v385
        %v401 = vpack.c.b16 %v398, %v397
        %v402 = vpack.c.b16 %v400, %v399
        %405 = vmatprep.subr.bf16.mxu0 0
        %406 = vmatpush1.bf16.msra.mxu0 %v401
        %407 = vmatprep.subr.bf16.mxu0 0
        %408 = vmatpush1.bf16.msra.mxu0 %v402
        %409 = vmatprep.subr.bf16.mxu0 0
        %410 = vmatpush1.bf16.msra.mxu0 0
        %411 = vmatprep.subr.bf16.mxu0 0
        %412 = vmatpush1.bf16.msra.mxu0 0
        %413 = vmatprep.subr.bf16.mxu0 0
        %414 = vmatpush1.bf16.msra.mxu0 0
        %415 = vmatprep.subr.bf16.mxu0 0
        %416 = vmatpush1.bf16.msra.mxu0 0
        %417 = vmatprep.subr.bf16.mxu0 0
        %418 = vmatpush1.bf16.msra.mxu0 0
        %419 = vmatprep.subr.bf16.mxu0 0
        %420 = vmatpush1.bf16.msra.mxu0 0
        %421 = vmatprep.subr.bf16.mxu0 0
        %422 = vmatpush1.bf16.msra.mxu0 0
        %423 = vmatprep.subr.bf16.mxu0 0
        %424 = vmatpush1.bf16.msra.mxu0 0
        %425 = vmatprep.subr.bf16.mxu0 0
        %426 = vmatpush1.bf16.msra.mxu0 0
        %427 = vmatprep.subr.bf16.mxu0 0
        %428 = vmatpush1.bf16.msra.mxu0 0
        %429 = vmatprep.subr.bf16.mxu0 0
        %430 = vmatpush1.bf16.msra.mxu0 0
        %431 = vmatprep.subr.bf16.mxu0 0
        %432 = vmatpush1.bf16.msra.mxu0 0
        %433 = vmatprep.subr.bf16.mxu0 0
        %434 = vmatpush1.bf16.msra.mxu0 0
        %435 = vmatprep.subr.bf16.mxu0 0
        %436 = vmatpush1.bf16.msra.mxu0 0
        %437 = vmatprep.mubr.bf16.mxu0 0
        %438 = vmatmul.mubr.bf16.gmra.mrb[0].mxu0 %v340
        %v439 = vpop.f32.mrb[0].mxu0
        %v440 = vadd.f32 %v391, %v439
        %v441 = vpop.f32.mrb[0].mxu0
        %v442 = vpop.f32.mrb[0].mxu0
        %v443 = vpop.f32.mrb[0].mxu0
        %444 = vdwg.mxu0
        %v445 = vld [vmem:[%s5] sm:$0xf]
        %v446 = vld [vmem:[%s5 + $0x4] sm:$0xf]
        %v447 = vld [vmem:[%s5 + $0x8] sm:$0xf]
        %v448 = vld [vmem:[%s5 + $0xc] sm:$0xf]
        %v449 = vld [vmem:[%s6] sm:$0x1]
        %v451 = vlaneseq
        %v452 = vshrl.u32 %v451, 7
        %v453 = vsub.s32 0, %v452
        %v454 = vrot.slane %v449, %v453
        %v460 = vunpack.c.l.b16 %v445
        %v461 = vunpack.c.l.b16 %v446
        %v462 = vunpack.c.l.b16 %v447
        %v463 = vunpack.c.l.b16 %v448
        %v464 = vpack.c.b16 %v461, %v460
        %v465 = vpack.c.b16 %v463, %v462
        %468 = vmatprep.subr.bf16.mxu0 0
        %469 = vmatpush1.bf16.msra.mxu0 %v464
        %470 = vmatprep.subr.bf16.mxu0 0
        %471 = vmatpush1.bf16.msra.mxu0 %v465
        %472 = vmatprep.subr.bf16.mxu0 0
        %473 = vmatpush1.bf16.msra.mxu0 0
        %474 = vmatprep.subr.bf16.mxu0 0
        %475 = vmatpush1.bf16.msra.mxu0 0
        %476 = vmatprep.subr.bf16.mxu0 0
        %477 = vmatpush1.bf16.msra.mxu0 0
        %478 = vmatprep.subr.bf16.mxu0 0
        %479 = vmatpush1.bf16.msra.mxu0 0
        %480 = vmatprep.subr.bf16.mxu0 0
        %481 = vmatpush1.bf16.msra.mxu0 0
        %482 = vmatprep.subr.bf16.mxu0 0
        %483 = vmatpush1.bf16.msra.mxu0 0
        %484 = vmatprep.subr.bf16.mxu0 0
        %485 = vmatpush1.bf16.msra.mxu0 0
        %486 = vmatprep.subr.bf16.mxu0 0
        %487 = vmatpush1.bf16.msra.mxu0 0
        %488 = vmatprep.subr.bf16.mxu0 0
        %489 = vmatpush1.bf16.msra.mxu0 0
        %490 = vmatprep.subr.bf16.mxu0 0
        %491 = vmatpush1.bf16.msra.mxu0 0
        %492 = vmatprep.subr.bf16.mxu0 0
        %493 = vmatpush1.bf16.msra.mxu0 0
        %494 = vmatprep.subr.bf16.mxu0 0
        %495 = vmatpush1.bf16.msra.mxu0 0
        %496 = vmatprep.subr.bf16.mxu0 0
        %497 = vmatpush1.bf16.msra.mxu0 0
        %498 = vmatprep.subr.bf16.mxu0 0
        %499 = vmatpush1.bf16.msra.mxu0 0
        %500 = vmatprep.mubr.bf16.mxu0 0
        %501 = vmatmul.mubr.bf16.gmra.mrb[0].mxu0 %v340
        %v502 = vpop.f32.mrb[0].mxu0
        %v503 = vadd.f32 %v454, %v502
        %v504 = vpop.f32.mrb[0].mxu0
        %v505 = vpop.f32.mrb[0].mxu0
        %v506 = vpop.f32.mrb[0].mxu0
        %507 = vdwg.mxu0
        %v508 = vmul.f32 %v377, 0.35355338
        %v509 = vpack.c.bf16 %v508, %v508
        %v510 = vpack.c.bf16 %v440, %v440
        %vm511 = vcmask 64512
        %v513 = vsel %vm511, %v509, 0
        %v516 = vsel %vm511, %v510, 0
        %518 = vmatprep.subr.bf16.mxu0 0
        %519 = vmatpush1.bf16.xpose.msra.mxu0 %v516
        %520 = vmatprep.subr.bf16.mxu0 0
        %521 = vmatpush1.bf16.xpose.msra.mxu0 0
        %522 = vmatprep.subr.bf16.mxu0 0
        %523 = vmatpush1.bf16.xpose.msra.mxu0 0
        %524 = vmatprep.subr.bf16.mxu0 0
        %525 = vmatpush1.bf16.xpose.msra.mxu0 0
        %526 = vmatprep.subr.bf16.mxu0 0
        %527 = vmatpush1.bf16.xpose.msra.mxu0 0
        %528 = vmatprep.subr.bf16.mxu0 0
        %529 = vmatpush1.bf16.xpose.msra.mxu0 0
        %530 = vmatprep.subr.bf16.mxu0 0
        %531 = vmatpush1.bf16.xpose.msra.mxu0 0
        %532 = vmatprep.subr.bf16.mxu0 0
        %533 = vmatpush1.bf16.xpose.msra.mxu0 0
        %534 = vmatprep.subr.bf16.mxu0 0
        %535 = vmatpush1.bf16.xpose.msra.mxu0 0
        %536 = vmatprep.subr.bf16.mxu0 0
        %537 = vmatpush1.bf16.xpose.msra.mxu0 0
        %538 = vmatprep.subr.bf16.mxu0 0
        %539 = vmatpush1.bf16.xpose.msra.mxu0 0
        %540 = vmatprep.subr.bf16.mxu0 0
        %541 = vmatpush1.bf16.xpose.msra.mxu0 0
        %542 = vmatprep.subr.bf16.mxu0 0
        %543 = vmatpush1.bf16.xpose.msra.mxu0 0
        %544 = vmatprep.subr.bf16.mxu0 0
        %545 = vmatpush1.bf16.xpose.msra.mxu0 0
        %546 = vmatprep.subr.bf16.mxu0 0
        %547 = vmatpush1.bf16.xpose.msra.mxu0 0
        %548 = vmatprep.subr.bf16.mxu0 0
        %549 = vmatpush1.bf16.xpose.msra.mxu0 0
        %550 = vmatprep.mubr.bf16.mxu0 0
        %551 = vmatmul.mubr.bf16.gmra.mrb[0].mxu0 %v513
        %v552 = vpop.f32.mrb[0].mxu0
        %v553 = vadd.f32 0.0, %v552
        %v554 = vpop.f32.mrb[0].mxu0
        %v555 = vpop.f32.mrb[0].mxu0
        %v556 = vpop.f32.mrb[0].mxu0
        %557 = vdwg.mxu0
        %v558 = vsel %vm511, %v553, -inf
        %559 = vmax.xlane.f32.xlu0 %v558
        %v560 = vpop.xlane.xlu0 %559
        %v561 = vsub.f32 %v553, %v560
        %v562 = vmul.f32 %v561, 1.442695
        %v563 = vpow.pop %v562
        %v564 = vsel %vm511, %v563, 0.0
        %565 = vadd.xlane.f32.xlu0 %v564
        %v566 = vpop.xlane.xlu0 %565
        %v567 = vrcp.pop %v566
        %v568 = vmul.f32 %v566, %v567
        %v569 = vsub.f32 2.0, %v568
        %v570 = vmul.f32 %v567, %v569
        %v571 = vmul.f32 %v563, %v570
        %572 = vst.msk [vmem:[%s307] sm:$0xff] %vm511, %v571
        %v573 = vpack.c.bf16 %v571, %v571
        %v574 = vpack.c.bf16 %v503, %v503
        %v576 = vsel %vm511, %v573, 0
        %vm578 = vcmask 1043456
        %v580 = vsel %vm578, %v574, 0
        %582 = vmatprep.subr.bf16.mxu0 0
        %583 = vmatpush1.bf16.msra.mxu0 %v580
        %584 = vmatprep.subr.bf16.mxu0 0
        %585 = vmatpush1.bf16.msra.mxu0 0
        %586 = vmatprep.subr.bf16.mxu0 0
        %587 = vmatpush1.bf16.msra.mxu0 0
        %588 = vmatprep.subr.bf16.mxu0 0
        %589 = vmatpush1.bf16.msra.mxu0 0
        %590 = vmatprep.subr.bf16.mxu0 0
        %591 = vmatpush1.bf16.msra.mxu0 0
        %592 = vmatprep.subr.bf16.mxu0 0
        %593 = vmatpush1.bf16.msra.mxu0 0
        %594 = vmatprep.subr.bf16.mxu0 0
        %595 = vmatpush1.bf16.msra.mxu0 0
        %596 = vmatprep.subr.bf16.mxu0 0
        %597 = vmatpush1.bf16.msra.mxu0 0
        %598 = vmatprep.subr.bf16.mxu0 0
        %599 = vmatpush1.bf16.msra.mxu0 0
        %600 = vmatprep.subr.bf16.mxu0 0
        %601 = vmatpush1.bf16.msra.mxu0 0
        %602 = vmatprep.subr.bf16.mxu0 0
        %603 = vmatpush1.bf16.msra.mxu0 0
        %604 = vmatprep.subr.bf16.mxu0 0
        %605 = vmatpush1.bf16.msra.mxu0 0
        %606 = vmatprep.subr.bf16.mxu0 0
        %607 = vmatpush1.bf16.msra.mxu0 0
        %608 = vmatprep.subr.bf16.mxu0 0
        %609 = vmatpush1.bf16.msra.mxu0 0
        %610 = vmatprep.subr.bf16.mxu0 0
        %611 = vmatpush1.bf16.msra.mxu0 0
        %612 = vmatprep.subr.bf16.mxu0 0
        %613 = vmatpush1.bf16.msra.mxu0 0
        %614 = vmatprep.mubr.bf16.mxu0 0
        %615 = vmatmul.mubr.bf16.gmra.mrb[0].mxu0 %v576
        %v616 = vpop.f32.mrb[0].mxu0
        %v617 = vadd.f32 0.0, %v616
        %v618 = vpop.f32.mrb[0].mxu0
        %v619 = vpop.f32.mrb[0].mxu0
        %v620 = vpop.f32.mrb[0].mxu0
        %621 = vdwg.mxu0
        %622 = vst.msk [vmem:[%s300] sm:$0xff] %vm511, %v617
        %s623 = sand.u32 %s186, 1
        %s624 = scalar_lea.sflag [#allocation3], %s623
        %s625 = sand.u32 %s186, 1
        %s626 = smul.addr %s625, 8
        %s627 = scalar_lea.vmem [#allocation2], %s626
        %s628 = sand.u32 %s212, 1
        %s629 = scalar_lea.sflag [#allocation5], %s628
        %s630 = sand.u32 %s212, 1
        %s631 = smul.addr %s630, 8
        %s632 = scalar_lea.vmem [#allocation4], %s631
        // Predicated region
        $region49: #{tpu_custom_call.1} parent=47 // pred_check
          %p633 = pneg %p196
        $region50: #{tpu_custom_call.1} parent=47 // pred_check_branch
          %635 = sbr.rel (%p633) target = $region52
        $region51: #{tpu_custom_call.1} parent=47 // pred_region
          %s637 = ssub.s32 128, 128
          %638 = vsyncadd %s624, %s637
          %s639 = smul.addr %s26, 128
          %s640 = scalar_lea.hbm %s7, %s639
          %s642 = sshll.u32 %s627, 4
          %s643 = int_to_ptr.vmem [resolvable:$true] %s642
          %645 = dma.vmem_to_hbm [thread:$0]  %s643, 128, %s640, %s624
        $region52: #{tpu_custom_call.1} parent=47 // pred_fallthru
          _
        // Predicated region
        $region53: #{tpu_custom_call.1} parent=47 // pred_check
          %p646 = pneg %p222
        $region54: #{tpu_custom_call.1} parent=47 // pred_check_branch
          %648 = sbr.rel (%p646) target = $region56
        $region55: #{tpu_custom_call.1} parent=47 // pred_region
          %s650 = ssub.s32 128, 128
          %651 = vsyncadd %s629, %s650
          %s652 = smul.addr %s26, 128
          %s653 = scalar_lea.hbm %s8, %s652
          %s655 = sshll.u32 %s632, 4
          %s656 = int_to_ptr.vmem [resolvable:$true] %s655
          %658 = dma.vmem_to_hbm [thread:$0]  %s656, 128, %s653, %s629
        $region56: #{tpu_custom_call.1} parent=47 // pred_fallthru
          _
      $region48: #{tpu_custom_call.1} parent=5 // pred_fallthru
        _
      %p659 = scmp.le.s32.totalorder 2, %s21
      // Predicated region
      $region57: #{tpu_custom_call.1} parent=5 // pred_check
        %p660 = pneg %p659
      $region58: #{tpu_custom_call.1} parent=5 // pred_check_branch
        %662 = sbr.rel (%p660) target = $region60
      $region59: #{tpu_custom_call.1} parent=5 // pred_region
        %s663 = ssub.s32 %s21, 2
        // Predicated region
        $region61: #{tpu_custom_call.1} parent=59 // pred_check
          %p664 = pneg %p202
        $region62: #{tpu_custom_call.1} parent=59 // pred_check_branch
          %666 = sbr.rel (%p664) target = $region64
        $region63: #{tpu_custom_call.1} parent=59 // pred_region
          %s667 = sand.u32 %s187, 1
          %s668 = scalar_lea.sflag [#allocation3], %s667
          %s669 = sand.u32 %s187, 1
          %s670 = smul.addr %s669, 8
          %s671 = scalar_lea.vmem [#allocation2], %s670
          %672 = dma.done %s668, 128
        $region64: #{tpu_custom_call.1} parent=59 // pred_fallthru
          _
        // Predicated region
        $region65: #{tpu_custom_call.1} parent=59 // pred_check
          %p673 = pneg %p228
        $region66: #{tpu_custom_call.1} parent=59 // pred_check_branch
          %675 = sbr.rel (%p673) target = $region68
        $region67: #{tpu_custom_call.1} parent=59 // pred_region
          %s676 = sand.u32 %s213, 1
          %s677 = scalar_lea.sflag [#allocation5], %s676
          %s678 = sand.u32 %s213, 1
          %s679 = smul.addr %s678, 8
          %s680 = scalar_lea.vmem [#allocation4], %s679
          %681 = dma.done %s677, 128
        $region68: #{tpu_custom_call.1} parent=59 // pred_fallthru
          _
      $region60: #{tpu_custom_call.1} parent=5 // pred_fallthru
        _
    $region6: #{tpu_custom_call.1} parent=1 // loop_footer
      %s25 = sadd.s32 1, %s21
    $region7: #{tpu_custom_call.1} parent=1 // loop_footer_branch
      %20 = sbr.rel target = $region3
    $region8: #{tpu_custom_call.1} parent=1 // loop_exit
      _
    %682 = vsyncpa [#allocation3], 1
    %s683 = scalar_lea.sflag [#allocation3], 1
    %684 = vsyncpa %s683, 1
    %685 = vsyncpa [#allocation5], 1
    %s686 = scalar_lea.sflag [#allocation5], 1
    %687 = vsyncpa %s686, 1

</llo_original>
